<compile_context>
chip_gen: v5e
topology: v5e:2x2
jax: 0.10.0
libtpu: 0.0.40
codegen_flags: <defaults>
</compile_context>

<pallas_src>
import functools

import jax
import jax.numpy as jnp
from jax.experimental import pallas as pl
from jax.experimental.pallas import tpu as pltpu

_LANE = 128      # lane width (last dim alignment)
_SUBLANE = 8     # sublane width (second-to-last dim alignment)


def _round_up(n, m):
    return ((n + m - 1) // m) * m


def _fused_ffnn_kernel(*refs, num_layers):
    """refs = (x_ref, w1, b1, w2, b2, ..., wN, bN, o_ref); all tiles in VMEM."""
    x_ref = refs[0]
    o_ref = refs[-1]
    p = refs[1:-1]

    h = x_ref[...]
    for i in range(num_layers):                      # compile-time unrolled (static depth)
        w_ref = p[2 * i]
        b_ref = p[2 * i + 1]
        h = jnp.dot(h, w_ref[...], preferred_element_type=jnp.float32) + b_ref[...]
        if i < num_layers - 1:
            h = jnp.maximum(h, 0.0)                  # ReLU
        else:
            h = jax.nn.sigmoid(h)                    # final layer
    o_ref[...] = h.astype(o_ref.dtype)


def init_ffnn_params(key, hidden_sizes, input_dim=200):
    """nn.Linear-style U(-1/sqrt(fan_in), 1/sqrt(fan_in)) init, zero-padded to tiles.

    Weights are stored as (in, out) so the kernel computes y = x @ W + b, which is
    equivalent to PyTorch's x @ W.T + b with W of shape (out, in).  Padded regions
    are exactly zero so they never leak into the real outputs.
    Returns (padded_params, true_dims).
    """
    dims = [input_dim] + list(hidden_sizes) + [1]
    params = []
    for i in range(len(dims) - 1):
        fan_in, fan_out = dims[i], dims[i + 1]
        pin, pout = _round_up(fan_in, _LANE), _round_up(fan_out, _LANE)
        key, kw, kb = jax.random.split(key, 3)
        bound = 1.0 / (fan_in ** 0.5)
        w = jax.random.uniform(kw, (fan_in, fan_out), jnp.float32, -bound, bound)
        b = jax.random.uniform(kb, (fan_out,), jnp.float32, -bound, bound)
        w_pad = jnp.zeros((pin, pout), jnp.float32).at[:fan_in, :fan_out].set(w)
        b_pad = jnp.zeros((1, pout), jnp.float32).at[0, :fan_out].set(b)
        params.append((w_pad, b_pad))
    return params, dims


def ffnn_forward(padded_params, x, *, out_dim=1, batch_tile=128):
    """Fused FFNN forward: one pallas_call, gridded over the batch dimension."""
    B, Din = x.shape
    num_layers = len(padded_params)
    din_pad = padded_params[0][0].shape[0]
    dout_pad = padded_params[-1][0].shape[1]
    assert Din <= din_pad

    # Batch tile: multiple of 8 sublanes, capped at `batch_tile` rows per grid step.
    tb = min(batch_tile, _round_up(B, _SUBLANE))
    b_pad = _round_up(B, tb)

    # Zero-pad input rows (extra batch rows) and lanes (Din -> din_pad).
    xp = jnp.zeros((b_pad, din_pad), jnp.float32).at[:B, :Din].set(x)

    in_specs = [pl.BlockSpec((tb, din_pad), lambda i: (i, 0))]   # x: tiled on batch
    flat_args = [xp]
    for (w, b) in padded_params:
        # Constant index_map -> weights/biases DMA'd once, stay VMEM-resident.
        in_specs.append(pl.BlockSpec(w.shape, lambda i: (0, 0)))
        in_specs.append(pl.BlockSpec(b.shape, lambda i: (0, 0)))
        flat_args.extend([w, b])

    kernel = functools.partial(_fused_ffnn_kernel, num_layers=num_layers)
    out_padded = pl.pallas_call(
        kernel,
        grid=(b_pad // tb,),
        out_shape=jax.ShapeDtypeStruct((b_pad, dout_pad), jnp.float32),
        in_specs=in_specs,
        out_specs=pl.BlockSpec((tb, dout_pad), lambda i: (i, 0)),
        compiler_params=pltpu.CompilerParams(
            dimension_semantics=("parallel",),   # batch grid shards across v7x TCs
        ),
    )(*flat_args)

    # Slice off batch padding and the padded output lanes (sigmoid(0)=0.5 lives there).
    return out_padded[:B, :out_dim]


if __name__ == "__main__":
    key = jax.random.PRNGKey(0)
    k_params, k_x = jax.random.split(key)

    input_dim = 200
    hidden_sizes = [64, 32]
    batch = 8

    padded_params, dims = init_ffnn_params(k_params, hidden_sizes, input_dim=input_dim)
    x = jax.random.normal(k_x, (batch, input_dim), dtype=jnp.float32)

    out = ffnn_forward(padded_params, x)
    out = jax.block_until_ready(out)

    # Pure-JAX reference using the real (unpadded) parameter slices.
    ref = x
    for li, (w_pad, b_pad) in enumerate(padded_params):
        fan_in, fan_out = dims[li], dims[li + 1]
        w = w_pad[:fan_in, :fan_out]
        b = b_pad[0, :fan_out]
        ref = ref @ w + b
        if li < len(padded_params) - 1:
            ref = jnp.maximum(ref, 0.0)
        else:
            ref = jax.nn.sigmoid(ref)

    assert out.shape == (batch, 1), out.shape
    assert jnp.allclose(out, ref, atol=1e-5, rtol=1e-5)
    print("KERNEL_OK")
</pallas_src>

<mosaic_0001>
module attributes {stable_mosaic.version = 11 : i64} {
  func.func @_fused_ffnn_kernel(%arg0: i32, %arg1: memref<8x256xf32, #tpu.memory_space<vmem>>, %arg2: memref<256x128xf32, #tpu.memory_space<vmem>>, %arg3: memref<1x128xf32, #tpu.memory_space<vmem>>, %arg4: memref<128x128xf32, #tpu.memory_space<vmem>>, %arg5: memref<1x128xf32, #tpu.memory_space<vmem>>, %arg6: memref<128x128xf32, #tpu.memory_space<vmem>>, %arg7: memref<1x128xf32, #tpu.memory_space<vmem>>, %arg8: memref<8x128xf32, #tpu.memory_space<vmem>>) attributes {dimension_semantics = [#tpu.dimension_semantics<parallel>], iteration_bounds = array<i64: 1>, scalar_prefetch = 0 : i64, scratch_operands = 0 : i64, tpu.core_type = #tpu.core_type<tc>, window_params = [{transform_indices = @transform_0, window_bounds = array<i64: 8, 256>}, {pipeline_mode = #tpu.pipeline_mode<synchronous>, transform_indices = @transform_1, window_bounds = array<i64: 256, 128>}, {pipeline_mode = #tpu.pipeline_mode<synchronous>, transform_indices = @transform_2, window_bounds = array<i64: 1, 128>}, {pipeline_mode = #tpu.pipeline_mode<synchronous>, transform_indices = @transform_3, window_bounds = array<i64: 128, 128>}, {pipeline_mode = #tpu.pipeline_mode<synchronous>, transform_indices = @transform_4, window_bounds = array<i64: 1, 128>}, {pipeline_mode = #tpu.pipeline_mode<synchronous>, transform_indices = @transform_5, window_bounds = array<i64: 128, 128>}, {pipeline_mode = #tpu.pipeline_mode<synchronous>, transform_indices = @transform_6, window_bounds = array<i64: 1, 128>}, {transform_indices = @transform_7, window_bounds = array<i64: 8, 128>}]} {
    %c0 = arith.constant 0 : index
    %c0_0 = arith.constant 0 : index
    %0 = vector.load %arg1[%c0, %c0_0] : memref<8x256xf32, #tpu.memory_space<vmem>>, vector<8x256xf32>
    %c0_1 = arith.constant 0 : index
    %c0_2 = arith.constant 0 : index
    %1 = vector.load %arg2[%c0_1, %c0_2] : memref<256x128xf32, #tpu.memory_space<vmem>>, vector<256x128xf32>
    %cst = arith.constant dense<0.000000e+00> : vector<8x128xf32>
    %2 = tpu.matmul %0, %1, %cst {dimension_numbers = #tpu.dot_dimension_numbers<[1], [0], [0], [1], [0, 0, 1, 1], [], []>} : vector<8x256xf32>, vector<256x128xf32>, vector<8x128xf32> -> vector<8x128xf32>
    %c0_3 = arith.constant 0 : index
    %c0_4 = arith.constant 0 : index
    %3 = vector.load %arg3[%c0_3, %c0_4] : memref<1x128xf32, #tpu.memory_space<vmem>>, vector<1x128xf32>
    %4 = vector.broadcast %3 : vector<1x128xf32> to vector<8x128xf32>
    %5 = arith.addf %2, %4 : vector<8x128xf32>
    %cst_5 = arith.constant 0.000000e+00 : f32
    %6 = vector.broadcast %cst_5 : f32 to vector<8x128xf32>
    %7 = arith.maximumf %5, %6 : vector<8x128xf32>
    %c0_6 = arith.constant 0 : index
    %c0_7 = arith.constant 0 : index
    %8 = vector.load %arg4[%c0_6, %c0_7] : memref<128x128xf32, #tpu.memory_space<vmem>>, vector<128x128xf32>
    %cst_8 = arith.constant dense<0.000000e+00> : vector<8x128xf32>
    %9 = tpu.matmul %7, %8, %cst_8 {dimension_numbers = #tpu.dot_dimension_numbers<[1], [0], [0], [1], [0, 0, 1, 1], [], []>} : vector<8x128xf32>, vector<128x128xf32>, vector<8x128xf32> -> vector<8x128xf32>
    %c0_9 = arith.constant 0 : index
    %c0_10 = arith.constant 0 : index
    %10 = vector.load %arg5[%c0_9, %c0_10] : memref<1x128xf32, #tpu.memory_space<vmem>>, vector<1x128xf32>
    %11 = vector.broadcast %10 : vector<1x128xf32> to vector<8x128xf32>
    %12 = arith.addf %9, %11 : vector<8x128xf32>
    %cst_11 = arith.constant 0.000000e+00 : f32
    %13 = vector.broadcast %cst_11 : f32 to vector<8x128xf32>
    %14 = arith.maximumf %12, %13 : vector<8x128xf32>
    %c0_12 = arith.constant 0 : index
    %c0_13 = arith.constant 0 : index
    %15 = vector.load %arg6[%c0_12, %c0_13] : memref<128x128xf32, #tpu.memory_space<vmem>>, vector<128x128xf32>
    %cst_14 = arith.constant dense<0.000000e+00> : vector<8x128xf32>
    %16 = tpu.matmul %14, %15, %cst_14 {dimension_numbers = #tpu.dot_dimension_numbers<[1], [0], [0], [1], [0, 0, 1, 1], [], []>} : vector<8x128xf32>, vector<128x128xf32>, vector<8x128xf32> -> vector<8x128xf32>
    %c0_15 = arith.constant 0 : index
    %c0_16 = arith.constant 0 : index
    %17 = vector.load %arg7[%c0_15, %c0_16] : memref<1x128xf32, #tpu.memory_space<vmem>>, vector<1x128xf32>
    %18 = vector.broadcast %17 : vector<1x128xf32> to vector<8x128xf32>
    %19 = arith.addf %16, %18 : vector<8x128xf32>
    %20 = arith.negf %19 : vector<8x128xf32>
    %21 = math.exp %20 : vector<8x128xf32>
    %cst_17 = arith.constant 1.000000e+00 : f32
    %22 = vector.broadcast %cst_17 : f32 to vector<8x128xf32>
    %23 = arith.addf %22, %21 : vector<8x128xf32>
    %24 = arith.divf %22, %23 : vector<8x128xf32>
    %c0_18 = arith.constant 0 : index
    %c0_19 = arith.constant 0 : index
    %25 = vector.load %arg8[%c0_18, %c0_19] : memref<8x128xf32, #tpu.memory_space<vmem>>, vector<8x128xf32>
    tpu.vector_store %arg8[%c0_18, %c0_19], %24 {strides = array<i32>} : memref<8x128xf32, #tpu.memory_space<vmem>>, vector<8x128xf32>,
    return
  }
  func.func @transform_0(%arg0: i32) -> (i32, i32) {
    %c0_i32 = arith.constant 0 : i32
    %c0_i32_0 = arith.constant 0 : i32
    return %arg0, %c0_i32 : i32, i32
  }
  func.func @transform_1(%arg0: i32) -> (i32, i32) {
    %c0_i32 = arith.constant 0 : i32
    %c0_i32_0 = arith.constant 0 : i32
    %c0_i32_1 = arith.constant 0 : i32
    return %c0_i32, %c0_i32_0 : i32, i32
  }
  func.func @transform_2(%arg0: i32) -> (i32, i32) {
    %c0_i32 = arith.constant 0 : i32
    %c0_i32_0 = arith.constant 0 : i32
    %c0_i32_1 = arith.constant 0 : i32
    return %c0_i32, %c0_i32_0 : i32, i32
  }
  func.func @transform_3(%arg0: i32) -> (i32, i32) {
    %c0_i32 = arith.constant 0 : i32
    %c0_i32_0 = arith.constant 0 : i32
    %c0_i32_1 = arith.constant 0 : i32
    return %c0_i32, %c0_i32_0 : i32, i32
  }
  func.func @transform_4(%arg0: i32) -> (i32, i32) {
    %c0_i32 = arith.constant 0 : i32
    %c0_i32_0 = arith.constant 0 : i32
    %c0_i32_1 = arith.constant 0 : i32
    return %c0_i32, %c0_i32_0 : i32, i32
  }
  func.func @transform_5(%arg0: i32) -> (i32, i32) {
    %c0_i32 = arith.constant 0 : i32
    %c0_i32_0 = arith.constant 0 : i32
    %c0_i32_1 = arith.constant 0 : i32
    return %c0_i32, %c0_i32_0 : i32, i32
  }
  func.func @transform_6(%arg0: i32) -> (i32, i32) {
    %c0_i32 = arith.constant 0 : i32
    %c0_i32_0 = arith.constant 0 : i32
    %c0_i32_1 = arith.constant 0 : i32
    return %c0_i32, %c0_i32_0 : i32, i32
  }
  func.func @transform_7(%arg0: i32) -> (i32, i32) {
    %c0_i32 = arith.constant 0 : i32
    %c0_i32_0 = arith.constant 0 : i32
    return %arg0, %c0_i32 : i32, i32
  }
}

</mosaic_0001>

<llo_original>
// kernel: tpu_custom_call.1
$region0: #{tpu_custom_call.1}
  #allocation0 [shape = 'u32[]', space=smem, size = 0x4, offset = 0x4, fixed_abs, tag = 'smem constant byte address 0x4 - core index']
  #allocation1 [shape = 'u32[72,128]{1,0:T(1,128)}', space=vmem, size = 0x9000, scoped, tag = 'internal scratch']
  %s0 = inlined_call_operand.hbm [shape: f32[8,256], index: 0, kind: input, shape index: {}]
  %s1 = inlined_call_operand.hbm [shape: f32[256,128], index: 1, kind: input, shape index: {}]
  %s2 = inlined_call_operand.vmem [shape: f32[1,128], index: 2, kind: input, shape index: {}]
  %s3 = inlined_call_operand.hbm [shape: f32[128,128], index: 3, kind: input, shape index: {}]
  %s4 = inlined_call_operand.vmem [shape: f32[1,128], index: 4, kind: input, shape index: {}]
  %s5 = inlined_call_operand.hbm [shape: f32[128,128], index: 5, kind: input, shape index: {}]
  %s6 = inlined_call_operand.vmem [shape: f32[1,128], index: 6, kind: input, shape index: {}]
  %s7 = inlined_call_operand.hbm [shape: f32[8,128], index: 7, kind: output, shape index: {}]
  %s8 = sld [smem:[#allocation0]]
  $region54: #{tpu_custom_call.1} parent=0
    _
  %s10 = ssub.s32 1, %s8
  %s11 = scalar_select 0, %s10, %s8
  $region1: #{tpu_custom_call.1} parent=0
    #allocation2 [shape = 'u8[8192]{0}', space=vmem, size = 0x2000, scoped, tag = 'input window, operand 0, single buffered']
    #allocation3 [shape = 's32[1]{0}', space=sflag, size = 0x4, scoped, tag = 'scoped memory for tpu_custom_call.1']
    #allocation4 [shape = 's32[1]{0}', space=sflag, size = 0x4, scoped, tag = 'scoped memory for tpu_custom_call.1']
    #allocation5 [shape = 'u8[131072]{0}', space=vmem, size = 0x20000, scoped, tag = 'input window, operand 1, single buffered']
    #allocation6 [shape = 's32[1]{0}', space=sflag, size = 0x4, scoped, tag = 'scoped memory for tpu_custom_call.1']
    #allocation7 [shape = 'u8[65536]{0}', space=vmem, size = 0x10000, scoped, tag = 'input window, operand 3, single buffered']
    #allocation8 [shape = 'u8[65536]{0}', space=vmem, size = 0x10000, scoped, tag = 'input window, operand 5, single buffered']
    #allocation9 [shape = 's32[1]{0}', space=sflag, size = 0x4, scoped, tag = 'scoped memory for tpu_custom_call.1']
    #allocation10 [shape = 'u8[4096]{0}', space=vmem, size = 0x1000, scoped, tag = 'output window, operand 0, single buffered']
    %12 = vsyncpa [#allocation3], 0
    %13 = vsyncpa [#allocation6], 0
    %14 = vsyncpa [#allocation9], 0
    %15 = vsyncpa [#allocation4], 0
    // Predicated region
    $region2: #{tpu_custom_call.1} parent=1 // pred_check
      _
    $region3: #{tpu_custom_call.1} parent=1 // pred_check_branch
      %17 = sbr.rel (0) target = $region5
    $region4: #{tpu_custom_call.1} parent=1 // pred_region
      %19 = vsyncadd [#allocation3], 0
      %s21 = sshll.u32 %s0, 4
      %s22 = int_to_ptr.hbm [resolvable:$true] %s21
      %s23 = sshll.u32 [#allocation2], 4
      %s24 = int_to_ptr.vmem [resolvable:$true] %s23
      %26 = dma.hbm_to_vmem [thread:$0]  %s22, 256, %s24, [#allocation3]
    $region5: #{tpu_custom_call.1} parent=1 // pred_fallthru
      _
    // Predicated region
    $region6: #{tpu_custom_call.1} parent=1 // pred_check
      _
    $region7: #{tpu_custom_call.1} parent=1 // pred_check_branch
      %28 = sbr.rel (0) target = $region9
    $region8: #{tpu_custom_call.1} parent=1 // pred_region
      %30 = vsyncadd [#allocation6], 0
      %s31 = sshll.u32 %s1, 4
      %s32 = int_to_ptr.hbm [resolvable:$true] %s31
      %s33 = sshll.u32 [#allocation5], 4
      %s34 = int_to_ptr.vmem [resolvable:$true] %s33
      %39 = dma.hbm_to_vmem [thread:$0]  %s32, 4096, %s34, [#allocation6], 128, 128, 8
    $region9: #{tpu_custom_call.1} parent=1 // pred_fallthru
      _
    // Predicated region
    $region10: #{tpu_custom_call.1} parent=1 // pred_check
      _
    $region11: #{tpu_custom_call.1} parent=1 // pred_check_branch
      %41 = sbr.rel (0) target = $region13
    $region12: #{tpu_custom_call.1} parent=1 // pred_region
      _
    $region13: #{tpu_custom_call.1} parent=1 // pred_fallthru
      _
    // Predicated region
    $region14: #{tpu_custom_call.1} parent=1 // pred_check
      _
    $region15: #{tpu_custom_call.1} parent=1 // pred_check_branch
      %43 = sbr.rel (0) target = $region17
    $region16: #{tpu_custom_call.1} parent=1 // pred_region
      %45 = vsyncadd [#allocation6], 0
      %s46 = sshll.u32 %s3, 4
      %s47 = int_to_ptr.hbm [resolvable:$true] %s46
      %s48 = sshll.u32 [#allocation7], 4
      %s49 = int_to_ptr.vmem [resolvable:$true] %s48
      %54 = dma.hbm_to_vmem [thread:$0]  %s47, 2048, %s49, [#allocation6], 128, 128, 8
    $region17: #{tpu_custom_call.1} parent=1 // pred_fallthru
      _
    // Predicated region
    $region18: #{tpu_custom_call.1} parent=1 // pred_check
      _
    $region19: #{tpu_custom_call.1} parent=1 // pred_check_branch
      %56 = sbr.rel (0) target = $region21
    $region20: #{tpu_custom_call.1} parent=1 // pred_region
      _
    $region21: #{tpu_custom_call.1} parent=1 // pred_fallthru
      _
    // Predicated region
    $region22: #{tpu_custom_call.1} parent=1 // pred_check
      _
    $region23: #{tpu_custom_call.1} parent=1 // pred_check_branch
      %58 = sbr.rel (0) target = $region25
    $region24: #{tpu_custom_call.1} parent=1 // pred_region
      %60 = vsyncadd [#allocation9], 0
      %s61 = sshll.u32 %s5, 4
      %s62 = int_to_ptr.hbm [resolvable:$true] %s61
      %s63 = sshll.u32 [#allocation8], 4
      %s64 = int_to_ptr.vmem [resolvable:$true] %s63
      %69 = dma.hbm_to_vmem [thread:$0]  %s62, 2048, %s64, [#allocation9], 128, 128, 8
    $region25: #{tpu_custom_call.1} parent=1 // pred_fallthru
      _
    // Predicated region
    $region26: #{tpu_custom_call.1} parent=1 // pred_check
      _
    $region27: #{tpu_custom_call.1} parent=1 // pred_check_branch
      %71 = sbr.rel (0) target = $region29
    $region28: #{tpu_custom_call.1} parent=1 // pred_region
      _
    $region29: #{tpu_custom_call.1} parent=1 // pred_fallthru
      _
    // Predicated region
    $region30: #{tpu_custom_call.1} parent=1 // pred_check
      _
    $region31: #{tpu_custom_call.1} parent=1 // pred_check_branch
      %73 = sbr.rel (0) target = $region33
    $region32: #{tpu_custom_call.1} parent=1 // pred_region
      %75 = dma.done [#allocation3], 256
    $region33: #{tpu_custom_call.1} parent=1 // pred_fallthru
      _
    // Predicated region
    $region34: #{tpu_custom_call.1} parent=1 // pred_check
      _
    $region35: #{tpu_custom_call.1} parent=1 // pred_check_branch
      %77 = sbr.rel (0) target = $region37
    $region36: #{tpu_custom_call.1} parent=1 // pred_region
      %79 = dma.done [#allocation6], 4096
    $region37: #{tpu_custom_call.1} parent=1 // pred_fallthru
      _
    // Predicated region
    $region38: #{tpu_custom_call.1} parent=1 // pred_check
      _
    $region39: #{tpu_custom_call.1} parent=1 // pred_check_branch
      %81 = sbr.rel (0) target = $region41
    $region40: #{tpu_custom_call.1} parent=1 // pred_region
      %83 = dma.done [#allocation6], 2048
    $region41: #{tpu_custom_call.1} parent=1 // pred_fallthru
      _
    // Predicated region
    $region42: #{tpu_custom_call.1} parent=1 // pred_check
      _
    $region43: #{tpu_custom_call.1} parent=1 // pred_check_branch
      %85 = sbr.rel (0) target = $region45
    $region44: #{tpu_custom_call.1} parent=1 // pred_region
      %87 = dma.done [#allocation9], 2048
    $region45: #{tpu_custom_call.1} parent=1 // pred_fallthru
      _
    %v88 = vld [vmem:[#allocation2] sm:$0xff]
    %v89 = vld [vmem:[#allocation2 + $0x8] sm:$0xff]
    %v90 = vld [vmem:[#allocation5] sm:$0xff]
    %v91 = vld [vmem:[#allocation5 + $0x8] sm:$0xff]
    %v92 = vld [vmem:[#allocation5 + $0x10] sm:$0xff]
    %v93 = vld [vmem:[#allocation5 + $0x18] sm:$0xff]
    %v94 = vld [vmem:[#allocation5 + $0x20] sm:$0xff]
    %v95 = vld [vmem:[#allocation5 + $0x28] sm:$0xff]
    %v96 = vld [vmem:[#allocation5 + $0x30] sm:$0xff]
    %v97 = vld [vmem:[#allocation5 + $0x38] sm:$0xff]
    %v98 = vld [vmem:[#allocation5 + $0x40] sm:$0xff]
    %v99 = vld [vmem:[#allocation5 + $0x48] sm:$0xff]
    %v100 = vld [vmem:[#allocation5 + $0x50] sm:$0xff]
    %v101 = vld [vmem:[#allocation5 + $0x58] sm:$0xff]
    %v102 = vld [vmem:[#allocation5 + $0x60] sm:$0xff]
    %v103 = vld [vmem:[#allocation5 + $0x68] sm:$0xff]
    %v104 = vld [vmem:[#allocation5 + $0x70] sm:$0xff]
    %v105 = vld [vmem:[#allocation5 + $0x78] sm:$0xff]
    %v106 = vld [vmem:[#allocation5 + $0x80] sm:$0xff]
    %v107 = vld [vmem:[#allocation5 + $0x88] sm:$0xff]
    %v108 = vld [vmem:[#allocation5 + $0x90] sm:$0xff]
    %v109 = vld [vmem:[#allocation5 + $0x98] sm:$0xff]
    %v110 = vld [vmem:[#allocation5 + $0xa0] sm:$0xff]
    %v111 = vld [vmem:[#allocation5 + $0xa8] sm:$0xff]
    %v112 = vld [vmem:[#allocation5 + $0xb0] sm:$0xff]
    %v113 = vld [vmem:[#allocation5 + $0xb8] sm:$0xff]
    %v114 = vld [vmem:[#allocation5 + $0xc0] sm:$0xff]
    %v115 = vld [vmem:[#allocation5 + $0xc8] sm:$0xff]
    %v116 = vld [vmem:[#allocation5 + $0xd0] sm:$0xff]
    %v117 = vld [vmem:[#allocation5 + $0xd8] sm:$0xff]
    %v118 = vld [vmem:[#allocation5 + $0xe0] sm:$0xff]
    %v119 = vld [vmem:[#allocation5 + $0xe8] sm:$0xff]
    %v120 = vld [vmem:[#allocation5 + $0xf0] sm:$0xff]
    %v121 = vld [vmem:[#allocation5 + $0xf8] sm:$0xff]
    %v122 = vld [vmem:[%s2] sm:$0x1]
    %v124 = vperm.slane %v122, 0
    %126 = vmatpush.msra.mxu0 %v105
    %127 = vmatpush.msra.mxu0 %v104
    %128 = vmatpush.msra.mxu0 %v103
    %129 = vmatpush.msra.mxu0 %v102
    %130 = vmatpush.msra.mxu0 %v101
    %131 = vmatpush.msra.mxu0 %v100
    %132 = vmatpush.msra.mxu0 %v99
    %133 = vmatpush.msra.mxu0 %v98
    %134 = vmatpush.msra.mxu0 %v97
    %135 = vmatpush.msra.mxu0 %v96
    %136 = vmatpush.msra.mxu0 %v95
    %137 = vmatpush.msra.mxu0 %v94
    %138 = vmatpush.msra.mxu0 %v93
    %139 = vmatpush.msra.mxu0 %v92
    %140 = vmatpush.msra.mxu0 %v91
    %141 = vmatpush.msra.mxu0 %v90
    %142 = vmatmul.f32.gmra.mxu0 %v88
    %v143 = vpop.f32.mrf.mxu0
    %v144 = vadd.f32 %v124, %v143
    %145 = vdwg.mxu0
    %146 = vmatpush.msra.mxu0 %v121
    %147 = vmatpush.msra.mxu0 %v120
    %148 = vmatpush.msra.mxu0 %v119
    %149 = vmatpush.msra.mxu0 %v118
    %150 = vmatpush.msra.mxu0 %v117
    %151 = vmatpush.msra.mxu0 %v116
    %152 = vmatpush.msra.mxu0 %v115
    %153 = vmatpush.msra.mxu0 %v114
    %154 = vmatpush.msra.mxu0 %v113
    %155 = vmatpush.msra.mxu0 %v112
    %156 = vmatpush.msra.mxu0 %v111
    %157 = vmatpush.msra.mxu0 %v110
    %158 = vmatpush.msra.mxu0 %v109
    %159 = vmatpush.msra.mxu0 %v108
    %160 = vmatpush.msra.mxu0 %v107
    %161 = vmatpush.msra.mxu0 %v106
    %162 = vmatmul.f32.gmra.mxu0 %v89
    %v163 = vpop.f32.mrf.mxu0
    %v164 = vadd.f32 %v144, %v163
    %165 = vdwg.mxu0
    %v166 = vmax.f32 %v164, 0.0
    %v167 = vld [vmem:[#allocation7] sm:$0xff]
    %v168 = vld [vmem:[#allocation7 + $0x8] sm:$0xff]
    %v169 = vld [vmem:[#allocation7 + $0x10] sm:$0xff]
    %v170 = vld [vmem:[#allocation7 + $0x18] sm:$0xff]
    %v171 = vld [vmem:[#allocation7 + $0x20] sm:$0xff]
    %v172 = vld [vmem:[#allocation7 + $0x28] sm:$0xff]
    %v173 = vld [vmem:[#allocation7 + $0x30] sm:$0xff]
    %v174 = vld [vmem:[#allocation7 + $0x38] sm:$0xff]
    %v175 = vld [vmem:[#allocation7 + $0x40] sm:$0xff]
    %v176 = vld [vmem:[#allocation7 + $0x48] sm:$0xff]
    %v177 = vld [vmem:[#allocation7 + $0x50] sm:$0xff]
    %v178 = vld [vmem:[#allocation7 + $0x58] sm:$0xff]
    %v179 = vld [vmem:[#allocation7 + $0x60] sm:$0xff]
    %v180 = vld [vmem:[#allocation7 + $0x68] sm:$0xff]
    %v181 = vld [vmem:[#allocation7 + $0x70] sm:$0xff]
    %v182 = vld [vmem:[#allocation7 + $0x78] sm:$0xff]
    %v183 = vld [vmem:[%s4] sm:$0x1]
    %v185 = vperm.slane %v183, 0
    %187 = vmatpush.msra.mxu0 %v182
    %188 = vmatpush.msra.mxu0 %v181
    %189 = vmatpush.msra.mxu0 %v180
    %190 = vmatpush.msra.mxu0 %v179
    %191 = vmatpush.msra.mxu0 %v178
    %192 = vmatpush.msra.mxu0 %v177
    %193 = vmatpush.msra.mxu0 %v176
    %194 = vmatpush.msra.mxu0 %v175
    %195 = vmatpush.msra.mxu0 %v174
    %196 = vmatpush.msra.mxu0 %v173
    %197 = vmatpush.msra.mxu0 %v172
    %198 = vmatpush.msra.mxu0 %v171
    %199 = vmatpush.msra.mxu0 %v170
    %200 = vmatpush.msra.mxu0 %v169
    %201 = vmatpush.msra.mxu0 %v168
    %202 = vmatpush.msra.mxu0 %v167
    %203 = vmatmul.f32.gmra.mxu0 %v166
    %v204 = vpop.f32.mrf.mxu0
    %v205 = vadd.f32 %v185, %v204
    %206 = vdwg.mxu0
    %v207 = vmax.f32 %v205, 0.0
    %v208 = vld [vmem:[#allocation8] sm:$0xff]
    %v209 = vld [vmem:[#allocation8 + $0x8] sm:$0xff]
    %v210 = vld [vmem:[#allocation8 + $0x10] sm:$0xff]
    %v211 = vld [vmem:[#allocation8 + $0x18] sm:$0xff]
    %v212 = vld [vmem:[#allocation8 + $0x20] sm:$0xff]
    %v213 = vld [vmem:[#allocation8 + $0x28] sm:$0xff]
    %v214 = vld [vmem:[#allocation8 + $0x30] sm:$0xff]
    %v215 = vld [vmem:[#allocation8 + $0x38] sm:$0xff]
    %v216 = vld [vmem:[#allocation8 + $0x40] sm:$0xff]
    %v217 = vld [vmem:[#allocation8 + $0x48] sm:$0xff]
    %v218 = vld [vmem:[#allocation8 + $0x50] sm:$0xff]
    %v219 = vld [vmem:[#allocation8 + $0x58] sm:$0xff]
    %v220 = vld [vmem:[#allocation8 + $0x60] sm:$0xff]
    %v221 = vld [vmem:[#allocation8 + $0x68] sm:$0xff]
    %v222 = vld [vmem:[#allocation8 + $0x70] sm:$0xff]
    %v223 = vld [vmem:[#allocation8 + $0x78] sm:$0xff]
    %v224 = vld [vmem:[%s6] sm:$0x1]
    %v226 = vperm.slane %v224, 0
    %228 = vmatpush.msra.mxu0 %v223
    %229 = vmatpush.msra.mxu0 %v222
    %230 = vmatpush.msra.mxu0 %v221
    %231 = vmatpush.msra.mxu0 %v220
    %232 = vmatpush.msra.mxu0 %v219
    %233 = vmatpush.msra.mxu0 %v218
    %234 = vmatpush.msra.mxu0 %v217
    %235 = vmatpush.msra.mxu0 %v216
    %236 = vmatpush.msra.mxu0 %v215
    %237 = vmatpush.msra.mxu0 %v214
    %238 = vmatpush.msra.mxu0 %v213
    %239 = vmatpush.msra.mxu0 %v212
    %240 = vmatpush.msra.mxu0 %v211
    %241 = vmatpush.msra.mxu0 %v210
    %242 = vmatpush.msra.mxu0 %v209
    %243 = vmatpush.msra.mxu0 %v208
    %244 = vmatmul.f32.gmra.mxu0 %v207
    %v245 = vpop.f32.mrf.mxu0
    %v246 = vadd.f32 %v226, %v245
    %247 = vdwg.mxu0
    %v248 = vxor.u32 %v246, 2147483648
    %v249 = vmul.f32 %v248, 1.442695
    %v250 = vpow.pop %v249
    %v251 = vadd.f32 %v250, 1.0
    %v252 = vrcp.pop %v251
    %v253 = vmul.f32 %v251, %v252
    %v254 = vsub.f32 1.0, %v253
    %v255 = vmul.f32 %v252, %v254
    %v256 = vadd.f32 %v252, %v255
    %vm257 = vweird.f32 %v251
    %vm258 = vweird.f32 %v252
    %vm259 = vmor %vm257, %vm258
    %v260 = vsel %vm259, %v252, %v256
    %v261 = vand.u32 2147483647, %v251
    %vm262 = vcmp.eq.f32.partialorder %v261, 8.507059e+37
    %v263 = vand.u32 %v251, 2147483648
    %v264 = vor.u32 1.1754944e-38, %v263
    %v265 = vsel %vm262, %v264, %v260
    %v266 = vmul.f32 1.0, %v265
    %267 = vst [vmem:[#allocation10] sm:$0xff] %v266
    // Predicated region
    $region46: #{tpu_custom_call.1} parent=1 // pred_check
      _
    $region47: #{tpu_custom_call.1} parent=1 // pred_check_branch
      %269 = sbr.rel (0) target = $region49
    $region48: #{tpu_custom_call.1} parent=1 // pred_region
      %271 = vsyncadd [#allocation4], 0
      %s273 = sshll.u32 [#allocation10], 4
      %s274 = int_to_ptr.vmem [resolvable:$true] %s273
      %s275 = sshll.u32 %s7, 4
      %s276 = int_to_ptr.hbm [resolvable:$true] %s275
      %278 = dma.vmem_to_hbm [thread:$0]  %s274, 128, %s276, [#allocation4]
    $region49: #{tpu_custom_call.1} parent=1 // pred_fallthru
      _
    // Predicated region
    $region50: #{tpu_custom_call.1} parent=1 // pred_check
      _
    $region51: #{tpu_custom_call.1} parent=1 // pred_check_branch
      %280 = sbr.rel (0) target = $region53
    $region52: #{tpu_custom_call.1} parent=1 // pred_region
      %282 = dma.done [#allocation4], 128
    $region53: #{tpu_custom_call.1} parent=1 // pred_fallthru
      _
    %283 = vsyncpa [#allocation3], 1
    %284 = vsyncpa [#allocation6], 1
    %285 = vsyncpa [#allocation9], 1
    %286 = vsyncpa [#allocation4], 1

</llo_original>
